<compile_context>
chip_gen: v6e
topology: v6e:2x2x1
jax: 0.10.0
libtpu: 0.0.40
codegen_flags: <defaults>
</compile_context>

<pallas_src>
import functools

import jax
import jax.numpy as jnp
import numpy as np
from jax import lax
from jax.experimental import pallas as pl
from jax.experimental.pallas import tpu as pltpu

LANES = 128
STRIP = 256          # rows per inner strip: (256, 128) f32 temporaries = 128 KiB
MAX_TILE_R = 4096    # rows per grid block: (4096, 128) f32 = 2 MiB per input
ALPHA = 1e-7
BETA = 0.15


def _round_up(v, m):
    return ((v + m - 1) // m) * m


def _silog_partials_kernel(x_ref, t_ref, out_ref, *,
                           tile_r, total_rows, min_depth, max_depth, ragged):
    """Per-block masked partial reduction (streaming, strip-mined).

    Writes per-lane partials for this block into its own output slot:
      out_ref[0, :] = count of valid pixels (per lane)
      out_ref[1, :] = sum of g              (per lane)
      out_ref[2, :] = sum of g * g          (per lane)
    with g = log(pred + alpha) - log(target + alpha) on valid pixels.
    """
    blk = pl.program_id(0)

    def strip_partials(r0, nrows):
        x = x_ref[pl.ds(r0, nrows), :].astype(jnp.float32)
        t = t_ref[pl.ds(r0, nrows), :].astype(jnp.float32)

        mask = jnp.logical_and(t > min_depth, t < max_depth)
        if ragged:
            # Only emitted when rows % tile_r != 0: per-row bounds check of
            # the final partial block (its OOB rows hold undefined data).
            row_ids = (blk * tile_r + r0
                       + lax.broadcasted_iota(jnp.int32, (nrows, 1), 0))
            mask = jnp.logical_and(mask, row_ids < total_rows)

        # keep log arguments strictly positive / finite on masked-out lanes
        xs = jnp.where(mask, x, 1.0)
        ts = jnp.where(mask, t, 1.0)
        g = jnp.log(xs + ALPHA) - jnp.log(ts + ALPHA)
        g = jnp.where(mask, g, 0.0)

        cnt = jnp.sum(mask.astype(jnp.float32), axis=0, keepdims=True)
        s = jnp.sum(g, axis=0, keepdims=True)
        s2 = jnp.sum(g * g, axis=0, keepdims=True)
        return cnt, s, s2

    num_strips = tile_r // STRIP
    rem_rows = tile_r % STRIP

    zero = jnp.zeros((1, LANES), jnp.float32)
    cnt_acc, s_acc, s2_acc = zero, zero, zero

    if num_strips:
        def body(i, carry):
            c, s, s2 = carry
            r0 = pl.multiple_of(i * STRIP, STRIP)
            dc, ds_, ds2 = strip_partials(r0, STRIP)
            return c + dc, s + ds_, s2 + ds2

        cnt_acc, s_acc, s2_acc = lax.fori_loop(
            0, num_strips, body, (cnt_acc, s_acc, s2_acc))

    if rem_rows:
        dc, ds_, ds2 = strip_partials(num_strips * STRIP, rem_rows)
        cnt_acc, s_acc, s2_acc = cnt_acc + dc, s_acc + ds_, s2_acc + ds2

    out_ref[0:1, :] = cnt_acc
    out_ref[1:2, :] = s_acc
    out_ref[2:3, :] = s2_acc


def silog_loss(pred, target, min_depth, max_depth, beta=BETA):
    """SILog loss forward. pred/target: NCHW arrays of identical shape."""
    assert pred.shape == target.shape, "spatial resize path not exercised"
    # TODO(synk): F.interpolate(mode='bilinear', align_corners=True) resize
    # when pred/target spatial sizes differ is not implemented here.
    # TODO(synk): additional_mask merge branch (data-dependent mask selection
    # with fallback + logging) is not implemented; additional_mask=None path.

    x = pred.reshape(-1)     # free row-major reshape, no dtype cast
    t = target.reshape(-1)
    n = x.shape[0]

    rem = n % LANES
    n_main = n - rem

    cnt = jnp.float32(0.0)
    s = jnp.float32(0.0)
    s2 = jnp.float32(0.0)

    if n_main:
        if rem:
            # TODO(synk): this prefix slice copies the main part when
            # numel % 128 != 0; the common (aligned) case has no copy at all.
            x_main, t_main = x[:n_main], t[:n_main]
        else:
            x_main, t_main = x, t

        rows = n_main // LANES
        x_main = x_main.reshape(rows, LANES)
        t_main = t_main.reshape(rows, LANES)

        # Block size: as large as possible (HBM-bound), but >= 2 blocks for
        # medium inputs so the parallel axis can use both TCs on v7x.
        if rows <= 16:
            tile_r = rows                                   # single full block
        elif rows < 2 * MAX_TILE_R:
            tile_r = min(_round_up(pl.cdiv(rows, 2), 8), MAX_TILE_R)
        else:
            tile_r = MAX_TILE_R
        num_blocks = pl.cdiv(rows, tile_r)
        ragged = (rows % tile_r) != 0

        kernel = functools.partial(
            _silog_partials_kernel,
            tile_r=tile_r,
            total_rows=rows,
            min_depth=float(min_depth),
            max_depth=float(max_depth),
            ragged=ragged,
        )

        partials = pl.pallas_call(
            kernel,
            out_shape=jax.ShapeDtypeStruct((num_blocks, 3, LANES), jnp.float32),
            grid_spec=pltpu.PrefetchScalarGridSpec(
                num_scalar_prefetch=0,
                grid=(num_blocks,),
                in_specs=[
                    pl.BlockSpec((tile_r, LANES), lambda i: (i, 0)),   # pred
                    pl.BlockSpec((tile_r, LANES), lambda i: (i, 0)),   # target
                ],
                out_specs=pl.BlockSpec((None, 3, LANES), lambda i: (i, 0, 0)),
            ),
            compiler_params=pltpu.CompilerParams(
                dimension_semantics=("parallel",)),
        )(x_main, t_main)

        # tiny final reduction over (num_blocks, 3, 128) per-lane partials
        # TODO(synk): f32 partial sums lose exactness past ~2^24 valid pixels;
        # switch to per-block Welford/Chan combining for very large inputs.
        tot = jnp.sum(partials, axis=(0, 2))          # -> (3,)
        cnt, s, s2 = tot[0], tot[1], tot[2]

    if rem:
        # <128-element tail handled directly in the wrapper (no padding).
        xt = x[n_main:].astype(jnp.float32)
        tt = t[n_main:].astype(jnp.float32)
        mt = jnp.logical_and(tt > min_depth, tt < max_depth)
        xs = jnp.where(mt, xt, 1.0)
        ts = jnp.where(mt, tt, 1.0)
        gt = jnp.where(mt, jnp.log(xs + ALPHA) - jnp.log(ts + ALPHA), 0.0)
        cnt = cnt + jnp.sum(mt.astype(jnp.float32))
        s = s + jnp.sum(gt)
        s2 = s2 + jnp.sum(gt * gt)

    mean = s / cnt
    # torch.var default is unbiased (N-1 denominator); clamp against
    # catastrophic cancellation of E[x^2] - E[x]^2 at float32.
    var = (s2 - cnt * mean * mean) / jnp.maximum(cnt - 1.0, 1.0)
    var = jnp.maximum(var, 0.0)
    dg = var + beta * mean * mean
    loss = 10.0 * jnp.sqrt(dg)
    # TODO(synk): PyTorch returns `input * 0.0` (a full tensor) when count<=1;
    # we return a scalar 0.0 in that degenerate case instead.
    return jnp.where(cnt <= 1.0, jnp.float32(0.0), loss)


if __name__ == "__main__":
    key = jax.random.PRNGKey(0)
    k1, k2, k3, k4 = jax.random.split(key, 4)

    min_depth, max_depth = 0.1, 10.0

    def ref_loss(p, t):
        p = np.asarray(p, np.float64).reshape(-1)
        t = np.asarray(t, np.float64).reshape(-1)
        m = (t > min_depth) & (t < max_depth)
        g = np.log(p[m] + ALPHA) - np.log(t[m] + ALPHA)
        return 10.0 * np.sqrt(g.var(ddof=1) + BETA * g.mean() ** 2)

    # Primary NCHW depth-map case (numel % 128 == 0 -> pure kernel path).
    B, C, H, W = 2, 1, 16, 16
    pred = jax.random.uniform(k1, (B, C, H, W), jnp.float32, 0.05, 12.0)
    target = jax.random.uniform(k2, (B, C, H, W), jnp.float32, 0.05, 12.0)
    loss = jax.block_until_ready(silog_loss(pred, target, min_depth, max_depth))
    ref = ref_loss(pred, target)
    assert np.isfinite(float(loss)), "loss is not finite"
    assert abs(float(loss) - ref) < 1e-3, f"mismatch: {float(loss)} vs {ref}"

    # Odd-sized case: exercises the ragged final grid block and the
    # <128-element wrapper tail path.
    B2, C2, H2, W2 = 2, 1, 63, 51
    pred2 = jax.random.uniform(k3, (B2, C2, H2, W2), jnp.float32, 0.05, 12.0)
    target2 = jax.random.uniform(k4, (B2, C2, H2, W2), jnp.float32, 0.05, 12.0)
    loss2 = jax.block_until_ready(silog_loss(pred2, target2, min_depth, max_depth))
    ref2 = ref_loss(pred2, target2)
    assert np.isfinite(float(loss2)), "loss2 is not finite"
    assert abs(float(loss2) - ref2) < 1e-3, f"mismatch: {float(loss2)} vs {ref2}"

    print("KERNEL_OK")
</pallas_src>

<mosaic_0001>
module attributes {stable_mosaic.version = 11 : i64} {
  func.func @_silog_partials_kernel(%arg0: i32, %arg1: memref<4x128xf32, #tpu.memory_space<vmem>>, %arg2: memref<4x128xf32, #tpu.memory_space<vmem>>, %arg3: memref<1x3x128xf32, #tpu.memory_space<vmem>>) attributes {dimension_semantics = [#tpu.dimension_semantics<parallel>], iteration_bounds = array<i64: 1>, scalar_prefetch = 0 : i64, scratch_operands = 0 : i64, tpu.core_type = #tpu.core_type<tc>, window_params = [{transform_indices = @transform_0, window_bounds = array<i64: 4, 128>}, {transform_indices = @transform_1, window_bounds = array<i64: 4, 128>}, {transform_indices = @transform_2, window_bounds = array<i64: 1, 3, 128>}]} {
    %cst = arith.constant 0.000000e+00 : f32
    %0 = vector.broadcast %cst : f32 to vector<1x128xf32>
    %c0 = arith.constant 0 : index
    %c0_0 = arith.constant 0 : index
    %1 = vector.load %arg1[%c0, %c0_0] : memref<4x128xf32, #tpu.memory_space<vmem>>, vector<4x128xf32>
    %c0_1 = arith.constant 0 : index
    %c0_2 = arith.constant 0 : index
    %2 = vector.load %arg2[%c0_1, %c0_2] : memref<4x128xf32, #tpu.memory_space<vmem>>, vector<4x128xf32>
    %cst_3 = arith.constant 1.000000e-01 : f32
    %3 = vector.broadcast %cst_3 : f32 to vector<4x128xf32>
    %4 = arith.cmpf ogt, %2, %3 : vector<4x128xf32>
    %cst_4 = arith.constant 1.000000e+01 : f32
    %5 = vector.broadcast %cst_4 : f32 to vector<4x128xf32>
    %6 = arith.cmpf olt, %2, %5 : vector<4x128xf32>
    %7 = arith.andi %4, %6 : vector<4x128xi1>
    %cst_5 = arith.constant 1.000000e+00 : f32
    %8 = vector.broadcast %cst_5 : f32 to vector<4x128xf32>
    %9 = arith.select %7, %1, %8 : vector<4x128xi1>, vector<4x128xf32>
    %cst_6 = arith.constant 1.000000e+00 : f32
    %10 = vector.broadcast %cst_6 : f32 to vector<4x128xf32>
    %11 = arith.select %7, %2, %10 : vector<4x128xi1>, vector<4x128xf32>
    %cst_7 = arith.constant 1.000000e-07 : f32
    %12 = vector.broadcast %cst_7 : f32 to vector<4x128xf32>
    %13 = arith.addf %9, %12 : vector<4x128xf32>
    %14 = math.log %13 : vector<4x128xf32>
    %cst_8 = arith.constant 1.000000e-07 : f32
    %15 = vector.broadcast %cst_8 : f32 to vector<4x128xf32>
    %16 = arith.addf %11, %15 : vector<4x128xf32>
    %17 = math.log %16 : vector<4x128xf32>
    %18 = arith.subf %14, %17 : vector<4x128xf32>
    %cst_9 = arith.constant 0.000000e+00 : f32
    %19 = vector.broadcast %cst_9 : f32 to vector<4x128xf32>
    %20 = arith.select %7, %18, %19 : vector<4x128xi1>, vector<4x128xf32>
    %21 = arith.extui %7 : vector<4x128xi1> to vector<4x128xi32>
    %22 = arith.sitofp %21 : vector<4x128xi32> to vector<4x128xf32>
    %cst_10 = arith.constant dense<0.000000e+00> : vector<128xf32>
    %23 = vector.multi_reduction <add>, %22, %cst_10 [0] : vector<4x128xf32> to vector<128xf32>
    %24 = vector.shape_cast %23 : vector<128xf32> to vector<1x128xf32>
    %cst_11 = arith.constant dense<0.000000e+00> : vector<128xf32>
    %25 = vector.multi_reduction <add>, %20, %cst_11 [0] : vector<4x128xf32> to vector<128xf32>
    %26 = vector.shape_cast %25 : vector<128xf32> to vector<1x128xf32>
    %27 = arith.mulf %20, %20 : vector<4x128xf32>
    %cst_12 = arith.constant dense<0.000000e+00> : vector<128xf32>
    %28 = vector.multi_reduction <add>, %27, %cst_12 [0] : vector<4x128xf32> to vector<128xf32>
    %29 = vector.shape_cast %28 : vector<128xf32> to vector<1x128xf32>
    %30 = arith.addf %0, %24 : vector<1x128xf32>
    %31 = arith.addf %0, %26 : vector<1x128xf32>
    %32 = arith.addf %0, %29 : vector<1x128xf32>
    %c0_13 = arith.constant 0 : index
    %c0_14 = arith.constant 0 : index
    %c0_15 = arith.constant 0 : index
    %33 = vector.load %arg3[%c0_13, %c0_14, %c0_15] : memref<1x3x128xf32, #tpu.memory_space<vmem>>, vector<1x1x128xf32>
    %34 = vector.shape_cast %33 : vector<1x1x128xf32> to vector<1x128xf32>
    %35 = vector.shape_cast %30 : vector<1x128xf32> to vector<1x1x128xf32>
    tpu.vector_store %arg3[%c0_13, %c0_14, %c0_15], %35 {strides = array<i32>} : memref<1x3x128xf32, #tpu.memory_space<vmem>>, vector<1x1x128xf32>,
    %c0_16 = arith.constant 0 : index
    %c1 = arith.constant 1 : index
    %c0_17 = arith.constant 0 : index
    %36 = vector.load %arg3[%c0_16, %c1, %c0_17] : memref<1x3x128xf32, #tpu.memory_space<vmem>>, vector<1x1x128xf32>
    %37 = vector.shape_cast %36 : vector<1x1x128xf32> to vector<1x128xf32>
    %38 = vector.shape_cast %31 : vector<1x128xf32> to vector<1x1x128xf32>
    tpu.vector_store %arg3[%c0_16, %c1, %c0_17], %38 {strides = array<i32>} : memref<1x3x128xf32, #tpu.memory_space<vmem>>, vector<1x1x128xf32>,
    %c0_18 = arith.constant 0 : index
    %c2 = arith.constant 2 : index
    %c0_19 = arith.constant 0 : index
    %39 = vector.load %arg3[%c0_18, %c2, %c0_19] : memref<1x3x128xf32, #tpu.memory_space<vmem>>, vector<1x1x128xf32>
    %40 = vector.shape_cast %39 : vector<1x1x128xf32> to vector<1x128xf32>
    %41 = vector.shape_cast %32 : vector<1x128xf32> to vector<1x1x128xf32>
    tpu.vector_store %arg3[%c0_18, %c2, %c0_19], %41 {strides = array<i32>} : memref<1x3x128xf32, #tpu.memory_space<vmem>>, vector<1x1x128xf32>,
    return
  }
  func.func @transform_0(%arg0: i32) -> (i32, i32) {
    %c0_i32 = arith.constant 0 : i32
    %c0_i32_0 = arith.constant 0 : i32
    return %arg0, %c0_i32 : i32, i32
  }
  func.func @transform_1(%arg0: i32) -> (i32, i32) {
    %c0_i32 = arith.constant 0 : i32
    %c0_i32_0 = arith.constant 0 : i32
    return %arg0, %c0_i32 : i32, i32
  }
  func.func @transform_2(%arg0: i32) -> (i32, i32, i32) {
    %c0_i32 = arith.constant 0 : i32
    %c0_i32_0 = arith.constant 0 : i32
    %c0_i32_1 = arith.constant 0 : i32
    return %arg0, %c0_i32, %c0_i32_0 : i32, i32, i32
  }
}

</mosaic_0001>

<llo_original>
// kernel: tpu_custom_call.1
$region0: #{tpu_custom_call.1}
  #allocation0 [shape = 'u32[]', space=smem, size = 0x4, offset = 0x4, fixed_abs, tag = 'smem constant byte address 0x4 - core index']
  #allocation1 [shape = 'u32[144,128]{1,0:T(1,128)}', space=vmem, size = 0x12000, scoped, tag = 'internal scratch']
  %s0 = inlined_call_operand.hbm [shape: f32[4,128], index: 0, kind: input, shape index: {}]
  %s1 = inlined_call_operand.hbm [shape: f32[4,128], index: 1, kind: input, shape index: {}]
  %s2 = inlined_call_operand.vmem [shape: f32[1,3,128], index: 2, kind: output, shape index: {}]
  %s3 = sld [smem:[#allocation0]]
  $region26: #{tpu_custom_call.1} parent=0
    _
  %s5 = ssub.s32 1, %s3
  %s6 = scalar_select 0, %s5, %s3
  $region1: #{tpu_custom_call.1} parent=0
    #allocation2 [shape = 'u8[2048]{0}', space=vmem, size = 0x800, scoped, tag = 'input window, operand 0, single buffered']
    #allocation3 [shape = 's32[1]{0}', space=sflag, size = 0x4, scoped, tag = 'scoped memory for tpu_custom_call.1']
    #allocation4 [shape = 'u8[2048]{0}', space=vmem, size = 0x800, scoped, tag = 'input window, operand 1, single buffered']
    #allocation5 [shape = 's32[1]{0}', space=sflag, size = 0x4, scoped, tag = 'scoped memory for tpu_custom_call.1']
    %7 = vsyncpa [#allocation3], 0
    %8 = vsyncpa [#allocation5], 0
    // Predicated region
    $region2: #{tpu_custom_call.1} parent=1 // pred_check
      _
    $region3: #{tpu_custom_call.1} parent=1 // pred_check_branch
      %10 = sbr.rel (0) target = $region5
    $region4: #{tpu_custom_call.1} parent=1 // pred_region
      %s12 = ssub.s32 64, 64
      %13 = vsyncadd [#allocation3], %s12
      %s15 = sshll.u32 [#allocation2], 4
      %s16 = int_to_ptr.vmem [resolvable:$true] %s15
      %18 = dma.hbm_to_vmem [thread:$0]  %s0, 64, %s16, [#allocation3]
    $region5: #{tpu_custom_call.1} parent=1 // pred_fallthru
      _
    // Predicated region
    $region6: #{tpu_custom_call.1} parent=1 // pred_check
      _
    $region7: #{tpu_custom_call.1} parent=1 // pred_check_branch
      %20 = sbr.rel (0) target = $region9
    $region8: #{tpu_custom_call.1} parent=1 // pred_region
      %s22 = ssub.s32 64, 64
      %23 = vsyncadd [#allocation5], %s22
      %s25 = sshll.u32 [#allocation4], 4
      %s26 = int_to_ptr.vmem [resolvable:$true] %s25
      %28 = dma.hbm_to_vmem [thread:$0]  %s1, 64, %s26, [#allocation5]
    $region9: #{tpu_custom_call.1} parent=1 // pred_fallthru
      _
    // Predicated region
    $region10: #{tpu_custom_call.1} parent=1 // pred_check
      _
    $region11: #{tpu_custom_call.1} parent=1 // pred_check_branch
      %30 = sbr.rel (0) target = $region13
    $region12: #{tpu_custom_call.1} parent=1 // pred_region
      %31 = dma.done [#allocation3], 64
    $region13: #{tpu_custom_call.1} parent=1 // pred_fallthru
      _
    // Predicated region
    $region14: #{tpu_custom_call.1} parent=1 // pred_check
      _
    $region15: #{tpu_custom_call.1} parent=1 // pred_check_branch
      %33 = sbr.rel (0) target = $region17
    $region16: #{tpu_custom_call.1} parent=1 // pred_region
      %34 = dma.done [#allocation5], 64
    $region17: #{tpu_custom_call.1} parent=1 // pred_fallthru
      _
    %v35 = vld [vmem:[#allocation2] sm:$0xf]
    %v36 = vld [vmem:[#allocation4] sm:$0xf]
    %vm37 = vcmp.gt.f32.partialorder %v36, 0.1
    %vm38 = vcmp.lt.f32.partialorder %v36, 10.0
    %vm39 = vmand %vm37, %vm38
    %v40 = vsel %vm39, %v35, 1.0
    %v41 = vsel %vm39, %v36, 1.0
    %v42 = vadd.f32 %v40, 1e-07
    %v43 = vlog2.pop %v42
    %v44 = vmul.f32 %v43, 0.6931472
    %v45 = vadd.f32 %v41, 1e-07
    %v46 = vlog2.pop %v45
    %v47 = vmul.f32 %v46, 0.6931472
    %v48 = vsub.f32 %v44, %v47
    %v49 = vsel %vm39, %v48, 0.0
    %v50 = vsel %vm39, 1, 0
    %v51 = vcvt.s32.f32 %v50
    %vm52 = vcmask 1043456
    %v53 = vsel %vm52, %v51, 0.0
    %v54 = vrot.slane %v53, 4
    %v55 = vadd.f32 %v53, %v54
    %v56 = vrot.slane %v55, 2
    %v57 = vadd.f32 %v55, %v56
    %v58 = vrot.slane %v57, 1
    %v59 = vadd.f32 %v57, %v58
    %v60 = vsel %vm52, %v49, 0.0
    %v61 = vrot.slane %v60, 4
    %v62 = vadd.f32 %v60, %v61
    %v63 = vrot.slane %v62, 2
    %v64 = vadd.f32 %v62, %v63
    %v65 = vrot.slane %v64, 1
    %v66 = vadd.f32 %v64, %v65
    %v67 = vmul.f32 %v49, %v49
    %v68 = vsel %vm52, %v67, 0.0
    %v69 = vrot.slane %v68, 4
    %v70 = vadd.f32 %v68, %v69
    %v71 = vrot.slane %v70, 2
    %v72 = vadd.f32 %v70, %v71
    %v73 = vrot.slane %v72, 1
    %v74 = vadd.f32 %v72, %v73
    %v75 = vadd.f32 %v59, 0.0
    %v76 = vadd.f32 %v66, 0.0
    %v77 = vadd.f32 %v74, 0.0
    %78 = vst [vmem:[%s2] sm:$0x1] %v75
    %79 = vst [vmem:[%s2 + $0x1] sm:$0x1] %v76
    %80 = vst [vmem:[%s2 + $0x2] sm:$0x1] %v77
    // Predicated region
    $region18: #{tpu_custom_call.1} parent=1 // pred_check
      _
    $region19: #{tpu_custom_call.1} parent=1 // pred_check_branch
      %82 = sbr.rel (0) target = $region21
    $region20: #{tpu_custom_call.1} parent=1 // pred_region
      _
    $region21: #{tpu_custom_call.1} parent=1 // pred_fallthru
      _
    // Predicated region
    $region22: #{tpu_custom_call.1} parent=1 // pred_check
      _
    $region23: #{tpu_custom_call.1} parent=1 // pred_check_branch
      %84 = sbr.rel (0) target = $region25
    $region24: #{tpu_custom_call.1} parent=1 // pred_region
      _
    $region25: #{tpu_custom_call.1} parent=1 // pred_fallthru
      _
    %85 = vsyncpa [#allocation3], 1
    %86 = vsyncpa [#allocation5], 1

</llo_original>
